<compile_context>
chip_gen: v6e
topology: v6e:2x2x1
jax: 0.10.0
libtpu: 0.0.40
codegen_flags: <defaults>
</compile_context>

<pallas_src>
import functools

import numpy as np
import jax
import jax.numpy as jnp
from jax import lax
from jax.experimental import pallas as pl
from jax.experimental.pallas import tpu as pltpu

_SUBLANE = 8
_BLOCK_BYTES = 2 * 1024 * 1024  # per-input-block VMEM budget (safe on v5e/v6e/v7x)


def _pool_kernel(num_taps, x_ref, o_ref):
    """Elementwise running max over the leading window-offset axis."""
    acc = x_ref[0]
    for t in range(1, num_taps):
        acc = jnp.maximum(acc, x_ref[t])
    o_ref[...] = acc


def _adaptive_indices(in_size, out_size):
    """PyTorch adaptive-pool windows -> (out_size, k) gather indices.

    Windows shorter than k repeat their last in-window element, which is
    harmless for a max reduction."""
    a = np.arange(out_size)
    starts = (a * in_size) // out_size
    ends = ((a + 1) * in_size + out_size - 1) // out_size  # ceil
    lens = ends - starts
    k = int(lens.max())
    idx = starts[:, None] + np.minimum(np.arange(k)[None, :], lens[:, None] - 1)
    return idx.astype(np.int32), k


def complex_adaptive_max_pool2d(x, output_size):
    """JAX/Pallas equivalent of ComplexAdaptiveMaxPool2d(output_size)(x)."""
    if isinstance(output_size, int):
        oh, ow = output_size, output_size
    else:
        oh, ow = output_size

    squeeze_batch = x.ndim == 3
    if squeeze_batch:
        x = x[None]
    b, c, h, w = x.shape

    # Split complex -> one stacked f32 array (one fused XLA pass over x).
    planes = jnp.stack(
        [jnp.real(x).astype(jnp.float32), jnp.imag(x).astype(jnp.float32)], axis=0
    )  # (2, B, C, H, W)

    if h % oh == 0 and w % ow == 0:
        # Uniform, non-overlapping windows: pure (free) dimension split.
        kh, kw = h // oh, w // ow
        win = planes.reshape(2, b, c, oh, kh, ow, kw)
    else:
        # General adaptive windows: static duplicate-index gather.
        h_idx, kh = _adaptive_indices(h, oh)
        w_idx, kw = _adaptive_indices(w, ow)
        win = planes[:, :, :, jnp.asarray(h_idx), :]      # (2,B,C,OH,kH,W)
        win = win[:, :, :, :, :, jnp.asarray(w_idx)]      # (2,B,C,OH,kH,OW,kW)

    # (2,B,C,OH,kH,OW,kW) -> (kH,kW, 2,B,C, OH,OW) -> (K, R, L).
    # One fused XLA transpose pass; gives the kernel a lane-dense layout.
    num_taps = kh * kw
    rows = 2 * b * c
    lanes = oh * ow
    slab = jnp.transpose(win, (4, 6, 0, 1, 2, 3, 5)).reshape(num_taps, rows, lanes)

    # Row tiling: largest block under the VMEM budget, multiple of 8 sublanes.
    bytes_per_row = num_taps * lanes * 4
    rows_fit = max(1, _BLOCK_BYTES // bytes_per_row)
    if rows_fit >= rows:
        tile_rows = rows
    else:
        tile_rows = max(_SUBLANE, (rows_fit // _SUBLANE) * _SUBLANE)
    grid = (pl.cdiv(rows, tile_rows),)

    out = pl.pallas_call(
        functools.partial(_pool_kernel, num_taps),
        out_shape=jax.ShapeDtypeStruct((rows, lanes), jnp.float32),
        grid=grid,
        in_specs=[pl.BlockSpec((num_taps, tile_rows, lanes), lambda r: (0, r, 0))],
        out_specs=pl.BlockSpec((tile_rows, lanes), lambda r: (r, 0)),
        compiler_params=pltpu.CompilerParams(
            dimension_semantics=("parallel",),
        ),
    )(slab)

    out = out.reshape(2, b, c, oh, ow)
    pooled = lax.complex(out[0], out[1])
    if squeeze_batch:
        pooled = pooled[0]
    return pooled


if __name__ == "__main__":
    key = jax.random.PRNGKey(0)
    kr, ki = jax.random.split(key)
    shape = (2, 4, 16, 16)
    x = lax.complex(
        jax.random.normal(kr, shape, dtype=jnp.float32),
        jax.random.normal(ki, shape, dtype=jnp.float32),
    )

    # --- divisible case: output_size = (4, 4) ------------------------------
    y = complex_adaptive_max_pool2d(x, (4, 4))
    y = jax.block_until_ready(y)
    assert y.shape == (2, 4, 4, 4) and y.dtype == x.dtype

    ref_r = jnp.real(x).reshape(2, 4, 4, 4, 4, 4).max(axis=(3, 5))
    ref_i = jnp.imag(x).reshape(2, 4, 4, 4, 4, 4).max(axis=(3, 5))
    assert bool(jnp.allclose(y.real, ref_r)) and bool(jnp.allclose(y.imag, ref_i))

    # --- non-divisible adaptive case (overlapping windows): (5, 3) ---------
    y2 = jax.block_until_ready(complex_adaptive_max_pool2d(x, (5, 3)))

    def ref_pool_plane(p, ohs, ows):
        _, _, hh, ww = p.shape
        out_rows = []
        for i in range(ohs):
            hs, he = (i * hh) // ohs, ((i + 1) * hh + ohs - 1) // ohs
            cols = []
            for j in range(ows):
                ws, we = (j * ww) // ows, ((j + 1) * ww + ows - 1) // ows
                cols.append(p[:, :, hs:he, ws:we].max(axis=(2, 3)))
            out_rows.append(jnp.stack(cols, axis=-1))
        return jnp.stack(out_rows, axis=-2)

    r2 = ref_pool_plane(jnp.real(x), 5, 3)
    i2 = ref_pool_plane(jnp.imag(x), 5, 3)
    assert y2.shape == (2, 4, 5, 3)
    assert bool(jnp.allclose(y2.real, r2)) and bool(jnp.allclose(y2.imag, i2))

    print("KERNEL_OK")
</pallas_src>

<mosaic_0001>
module attributes {stable_mosaic.version = 11 : i64} {
  func.func @_pool_kernel(%arg0: i32, %arg1: memref<16x16x16xf32, #tpu.memory_space<vmem>>, %arg2: memref<16x16xf32, #tpu.memory_space<vmem>>) attributes {dimension_semantics = [#tpu.dimension_semantics<parallel>], iteration_bounds = array<i64: 1>, scalar_prefetch = 0 : i64, scratch_operands = 0 : i64, tpu.core_type = #tpu.core_type<tc>, window_params = [{transform_indices = @transform_0, window_bounds = array<i64: 16, 16, 16>}, {transform_indices = @transform_1, window_bounds = array<i64: 16, 16>}]} {
    %c0 = arith.constant 0 : index
    %c0_0 = arith.constant 0 : index
    %c0_1 = arith.constant 0 : index
    %0 = vector.load %arg1[%c0, %c0_0, %c0_1] : memref<16x16x16xf32, #tpu.memory_space<vmem>>, vector<1x16x16xf32>
    %1 = vector.shape_cast %0 : vector<1x16x16xf32> to vector<16x16xf32>
    %c1 = arith.constant 1 : index
    %c0_2 = arith.constant 0 : index
    %c0_3 = arith.constant 0 : index
    %2 = vector.load %arg1[%c1, %c0_2, %c0_3] : memref<16x16x16xf32, #tpu.memory_space<vmem>>, vector<1x16x16xf32>
    %3 = vector.shape_cast %2 : vector<1x16x16xf32> to vector<16x16xf32>
    %4 = arith.maximumf %1, %3 : vector<16x16xf32>
    %c2 = arith.constant 2 : index
    %c0_4 = arith.constant 0 : index
    %c0_5 = arith.constant 0 : index
    %5 = vector.load %arg1[%c2, %c0_4, %c0_5] : memref<16x16x16xf32, #tpu.memory_space<vmem>>, vector<1x16x16xf32>
    %6 = vector.shape_cast %5 : vector<1x16x16xf32> to vector<16x16xf32>
    %7 = arith.maximumf %4, %6 : vector<16x16xf32>
    %c3 = arith.constant 3 : index
    %c0_6 = arith.constant 0 : index
    %c0_7 = arith.constant 0 : index
    %8 = vector.load %arg1[%c3, %c0_6, %c0_7] : memref<16x16x16xf32, #tpu.memory_space<vmem>>, vector<1x16x16xf32>
    %9 = vector.shape_cast %8 : vector<1x16x16xf32> to vector<16x16xf32>
    %10 = arith.maximumf %7, %9 : vector<16x16xf32>
    %c4 = arith.constant 4 : index
    %c0_8 = arith.constant 0 : index
    %c0_9 = arith.constant 0 : index
    %11 = vector.load %arg1[%c4, %c0_8, %c0_9] : memref<16x16x16xf32, #tpu.memory_space<vmem>>, vector<1x16x16xf32>
    %12 = vector.shape_cast %11 : vector<1x16x16xf32> to vector<16x16xf32>
    %13 = arith.maximumf %10, %12 : vector<16x16xf32>
    %c5 = arith.constant 5 : index
    %c0_10 = arith.constant 0 : index
    %c0_11 = arith.constant 0 : index
    %14 = vector.load %arg1[%c5, %c0_10, %c0_11] : memref<16x16x16xf32, #tpu.memory_space<vmem>>, vector<1x16x16xf32>
    %15 = vector.shape_cast %14 : vector<1x16x16xf32> to vector<16x16xf32>
    %16 = arith.maximumf %13, %15 : vector<16x16xf32>
    %c6 = arith.constant 6 : index
    %c0_12 = arith.constant 0 : index
    %c0_13 = arith.constant 0 : index
    %17 = vector.load %arg1[%c6, %c0_12, %c0_13] : memref<16x16x16xf32, #tpu.memory_space<vmem>>, vector<1x16x16xf32>
    %18 = vector.shape_cast %17 : vector<1x16x16xf32> to vector<16x16xf32>
    %19 = arith.maximumf %16, %18 : vector<16x16xf32>
    %c7 = arith.constant 7 : index
    %c0_14 = arith.constant 0 : index
    %c0_15 = arith.constant 0 : index
    %20 = vector.load %arg1[%c7, %c0_14, %c0_15] : memref<16x16x16xf32, #tpu.memory_space<vmem>>, vector<1x16x16xf32>
    %21 = vector.shape_cast %20 : vector<1x16x16xf32> to vector<16x16xf32>
    %22 = arith.maximumf %19, %21 : vector<16x16xf32>
    %c8 = arith.constant 8 : index
    %c0_16 = arith.constant 0 : index
    %c0_17 = arith.constant 0 : index
    %23 = vector.load %arg1[%c8, %c0_16, %c0_17] : memref<16x16x16xf32, #tpu.memory_space<vmem>>, vector<1x16x16xf32>
    %24 = vector.shape_cast %23 : vector<1x16x16xf32> to vector<16x16xf32>
    %25 = arith.maximumf %22, %24 : vector<16x16xf32>
    %c9 = arith.constant 9 : index
    %c0_18 = arith.constant 0 : index
    %c0_19 = arith.constant 0 : index
    %26 = vector.load %arg1[%c9, %c0_18, %c0_19] : memref<16x16x16xf32, #tpu.memory_space<vmem>>, vector<1x16x16xf32>
    %27 = vector.shape_cast %26 : vector<1x16x16xf32> to vector<16x16xf32>
    %28 = arith.maximumf %25, %27 : vector<16x16xf32>
    %c10 = arith.constant 10 : index
    %c0_20 = arith.constant 0 : index
    %c0_21 = arith.constant 0 : index
    %29 = vector.load %arg1[%c10, %c0_20, %c0_21] : memref<16x16x16xf32, #tpu.memory_space<vmem>>, vector<1x16x16xf32>
    %30 = vector.shape_cast %29 : vector<1x16x16xf32> to vector<16x16xf32>
    %31 = arith.maximumf %28, %30 : vector<16x16xf32>
    %c11 = arith.constant 11 : index
    %c0_22 = arith.constant 0 : index
    %c0_23 = arith.constant 0 : index
    %32 = vector.load %arg1[%c11, %c0_22, %c0_23] : memref<16x16x16xf32, #tpu.memory_space<vmem>>, vector<1x16x16xf32>
    %33 = vector.shape_cast %32 : vector<1x16x16xf32> to vector<16x16xf32>
    %34 = arith.maximumf %31, %33 : vector<16x16xf32>
    %c12 = arith.constant 12 : index
    %c0_24 = arith.constant 0 : index
    %c0_25 = arith.constant 0 : index
    %35 = vector.load %arg1[%c12, %c0_24, %c0_25] : memref<16x16x16xf32, #tpu.memory_space<vmem>>, vector<1x16x16xf32>
    %36 = vector.shape_cast %35 : vector<1x16x16xf32> to vector<16x16xf32>
    %37 = arith.maximumf %34, %36 : vector<16x16xf32>
    %c13 = arith.constant 13 : index
    %c0_26 = arith.constant 0 : index
    %c0_27 = arith.constant 0 : index
    %38 = vector.load %arg1[%c13, %c0_26, %c0_27] : memref<16x16x16xf32, #tpu.memory_space<vmem>>, vector<1x16x16xf32>
    %39 = vector.shape_cast %38 : vector<1x16x16xf32> to vector<16x16xf32>
    %40 = arith.maximumf %37, %39 : vector<16x16xf32>
    %c14 = arith.constant 14 : index
    %c0_28 = arith.constant 0 : index
    %c0_29 = arith.constant 0 : index
    %41 = vector.load %arg1[%c14, %c0_28, %c0_29] : memref<16x16x16xf32, #tpu.memory_space<vmem>>, vector<1x16x16xf32>
    %42 = vector.shape_cast %41 : vector<1x16x16xf32> to vector<16x16xf32>
    %43 = arith.maximumf %40, %42 : vector<16x16xf32>
    %c15 = arith.constant 15 : index
    %c0_30 = arith.constant 0 : index
    %c0_31 = arith.constant 0 : index
    %44 = vector.load %arg1[%c15, %c0_30, %c0_31] : memref<16x16x16xf32, #tpu.memory_space<vmem>>, vector<1x16x16xf32>
    %45 = vector.shape_cast %44 : vector<1x16x16xf32> to vector<16x16xf32>
    %46 = arith.maximumf %43, %45 : vector<16x16xf32>
    %c0_32 = arith.constant 0 : index
    %c0_33 = arith.constant 0 : index
    %47 = vector.load %arg2[%c0_32, %c0_33] : memref<16x16xf32, #tpu.memory_space<vmem>>, vector<16x16xf32>
    tpu.vector_store %arg2[%c0_32, %c0_33], %46 {strides = array<i32>} : memref<16x16xf32, #tpu.memory_space<vmem>>, vector<16x16xf32>,
    return
  }
  func.func @transform_0(%arg0: i32) -> (i32, i32, i32) {
    %c0_i32 = arith.constant 0 : i32
    %c0_i32_0 = arith.constant 0 : i32
    %c0_i32_1 = arith.constant 0 : i32
    return %c0_i32, %arg0, %c0_i32_0 : i32, i32, i32
  }
  func.func @transform_1(%arg0: i32) -> (i32, i32) {
    %c0_i32 = arith.constant 0 : i32
    %c0_i32_0 = arith.constant 0 : i32
    return %arg0, %c0_i32 : i32, i32
  }
}

</mosaic_0001>

<llo_original>
// kernel: tpu_custom_call.1
$region0: #{tpu_custom_call.1}
  #allocation0 [shape = 'u32[]', space=smem, size = 0x4, offset = 0x4, fixed_abs, tag = 'smem constant byte address 0x4 - core index']
  #allocation1 [shape = 'u32[144,128]{1,0:T(1,128)}', space=vmem, size = 0x12000, scoped, tag = 'internal scratch']
  %s0 = inlined_call_operand.hbm [shape: f32[16,16,16], index: 0, kind: input, shape index: {}]
  %s1 = inlined_call_operand.hbm [shape: f32[16,16], index: 1, kind: output, shape index: {}]
  %s2 = sld [smem:[#allocation0]]
  $region18: #{tpu_custom_call.1} parent=0
    _
  %s4 = ssub.s32 1, %s2
  %s5 = scalar_select 0, %s4, %s2
  $region1: #{tpu_custom_call.1} parent=0
    #allocation2 [shape = 'u8[131072]{0}', space=vmem, size = 0x20000, scoped, tag = 'input window, operand 0, single buffered']
    #allocation3 [shape = 's32[1]{0}', space=sflag, size = 0x4, scoped, tag = 'scoped memory for tpu_custom_call.1']
    #allocation4 [shape = 's32[1]{0}', space=sflag, size = 0x4, scoped, tag = 'scoped memory for tpu_custom_call.1']
    #allocation5 [shape = 'u8[8192]{0}', space=vmem, size = 0x2000, scoped, tag = 'output window, operand 0, single buffered']
    %6 = vsyncpa [#allocation3], 0
    %7 = vsyncpa [#allocation4], 0
    // Predicated region
    $region2: #{tpu_custom_call.1} parent=1 // pred_check
      _
    $region3: #{tpu_custom_call.1} parent=1 // pred_check_branch
      %9 = sbr.rel (0) target = $region5
    $region4: #{tpu_custom_call.1} parent=1 // pred_region
      %s11 = ssub.s32 4096, 4096
      %12 = vsyncadd [#allocation3], %s11
      %s13 = sshll.u32 [#allocation2], 4
      %s14 = int_to_ptr.vmem [resolvable:$true] %s13
      %19 = dma.hbm_to_vmem [thread:$0]  %s0, 4096, %s14, [#allocation3], 128, 128, 8
    $region5: #{tpu_custom_call.1} parent=1 // pred_fallthru
      _
    // Predicated region
    $region6: #{tpu_custom_call.1} parent=1 // pred_check
      _
    $region7: #{tpu_custom_call.1} parent=1 // pred_check_branch
      %21 = sbr.rel (0) target = $region9
    $region8: #{tpu_custom_call.1} parent=1 // pred_region
      %22 = dma.done [#allocation3], 4096
    $region9: #{tpu_custom_call.1} parent=1 // pred_fallthru
      _
    %v23 = vld [vmem:[#allocation2] sm:$0xff]
    %v24 = vld [vmem:[#allocation2 + $0x8] sm:$0xff]
    %s25 = scalar_lea.vmem [#allocation2], 16
    %v26 = vld [vmem:[%s25] sm:$0xff]
    %v27 = vld [vmem:[%s25 + $0x8] sm:$0xff]
    %v28 = vmax.f32 %v23, %v26
    %v29 = vmax.f32 %v24, %v27
    %s30 = scalar_lea.vmem [#allocation2], 32
    %v31 = vld [vmem:[%s30] sm:$0xff]
    %v32 = vld [vmem:[%s30 + $0x8] sm:$0xff]
    %v33 = vmax.f32 %v28, %v31
    %v34 = vmax.f32 %v29, %v32
    %s35 = scalar_lea.vmem [#allocation2], 48
    %v36 = vld [vmem:[%s35] sm:$0xff]
    %v37 = vld [vmem:[%s35 + $0x8] sm:$0xff]
    %v38 = vmax.f32 %v33, %v36
    %v39 = vmax.f32 %v34, %v37
    %s40 = scalar_lea.vmem [#allocation2], 64
    %v41 = vld [vmem:[%s40] sm:$0xff]
    %v42 = vld [vmem:[%s40 + $0x8] sm:$0xff]
    %v43 = vmax.f32 %v38, %v41
    %v44 = vmax.f32 %v39, %v42
    %s45 = scalar_lea.vmem [#allocation2], 80
    %v46 = vld [vmem:[%s45] sm:$0xff]
    %v47 = vld [vmem:[%s45 + $0x8] sm:$0xff]
    %v48 = vmax.f32 %v43, %v46
    %v49 = vmax.f32 %v44, %v47
    %s50 = scalar_lea.vmem [#allocation2], 96
    %v51 = vld [vmem:[%s50] sm:$0xff]
    %v52 = vld [vmem:[%s50 + $0x8] sm:$0xff]
    %v53 = vmax.f32 %v48, %v51
    %v54 = vmax.f32 %v49, %v52
    %s55 = scalar_lea.vmem [#allocation2], 112
    %v56 = vld [vmem:[%s55] sm:$0xff]
    %v57 = vld [vmem:[%s55 + $0x8] sm:$0xff]
    %v58 = vmax.f32 %v53, %v56
    %v59 = vmax.f32 %v54, %v57
    %s60 = scalar_lea.vmem [#allocation2], 128
    %v61 = vld [vmem:[%s60] sm:$0xff]
    %v62 = vld [vmem:[%s60 + $0x8] sm:$0xff]
    %v63 = vmax.f32 %v58, %v61
    %v64 = vmax.f32 %v59, %v62
    %s65 = scalar_lea.vmem [#allocation2], 144
    %v66 = vld [vmem:[%s65] sm:$0xff]
    %v67 = vld [vmem:[%s65 + $0x8] sm:$0xff]
    %v68 = vmax.f32 %v63, %v66
    %v69 = vmax.f32 %v64, %v67
    %s70 = scalar_lea.vmem [#allocation2], 160
    %v71 = vld [vmem:[%s70] sm:$0xff]
    %v72 = vld [vmem:[%s70 + $0x8] sm:$0xff]
    %v73 = vmax.f32 %v68, %v71
    %v74 = vmax.f32 %v69, %v72
    %s75 = scalar_lea.vmem [#allocation2], 176
    %v76 = vld [vmem:[%s75] sm:$0xff]
    %v77 = vld [vmem:[%s75 + $0x8] sm:$0xff]
    %v78 = vmax.f32 %v73, %v76
    %v79 = vmax.f32 %v74, %v77
    %s80 = scalar_lea.vmem [#allocation2], 192
    %v81 = vld [vmem:[%s80] sm:$0xff]
    %v82 = vld [vmem:[%s80 + $0x8] sm:$0xff]
    %v83 = vmax.f32 %v78, %v81
    %v84 = vmax.f32 %v79, %v82
    %s85 = scalar_lea.vmem [#allocation2], 208
    %v86 = vld [vmem:[%s85] sm:$0xff]
    %v87 = vld [vmem:[%s85 + $0x8] sm:$0xff]
    %v88 = vmax.f32 %v83, %v86
    %v89 = vmax.f32 %v84, %v87
    %s90 = scalar_lea.vmem [#allocation2], 224
    %v91 = vld [vmem:[%s90] sm:$0xff]
    %v92 = vld [vmem:[%s90 + $0x8] sm:$0xff]
    %v93 = vmax.f32 %v88, %v91
    %v94 = vmax.f32 %v89, %v92
    %s95 = scalar_lea.vmem [#allocation2], 240
    %v96 = vld [vmem:[%s95] sm:$0xff]
    %v97 = vld [vmem:[%s95 + $0x8] sm:$0xff]
    %v98 = vmax.f32 %v93, %v96
    %v99 = vmax.f32 %v94, %v97
    %vm100 = vcmask 130048
    %101 = vst.msk [vmem:[#allocation5] sm:$0xff] %vm100, %v98
    %102 = vst.msk [vmem:[#allocation5 + $0x8] sm:$0xff] %vm100, %v99
    // Predicated region
    $region10: #{tpu_custom_call.1} parent=1 // pred_check
      _
    $region11: #{tpu_custom_call.1} parent=1 // pred_check_branch
      %104 = sbr.rel (0) target = $region13
    $region12: #{tpu_custom_call.1} parent=1 // pred_region
      %s106 = ssub.s32 256, 256
      %107 = vsyncadd [#allocation4], %s106
      %s108 = sshll.u32 [#allocation5], 4
      %s109 = int_to_ptr.vmem [resolvable:$true] %s108
      %114 = dma.vmem_to_hbm [thread:$0]  %s109, 256, %s1, [#allocation4], 128, 128, 8
    $region13: #{tpu_custom_call.1} parent=1 // pred_fallthru
      _
    // Predicated region
    $region14: #{tpu_custom_call.1} parent=1 // pred_check
      _
    $region15: #{tpu_custom_call.1} parent=1 // pred_check_branch
      %116 = sbr.rel (0) target = $region17
    $region16: #{tpu_custom_call.1} parent=1 // pred_region
      %117 = dma.done [#allocation4], 256
    $region17: #{tpu_custom_call.1} parent=1 // pred_fallthru
      _
    %118 = vsyncpa [#allocation3], 1
    %119 = vsyncpa [#allocation4], 1

</llo_original>
